<compile_context>
chip_gen: v7x
topology: tpu7x:2x2x1
jax: 0.10.0
libtpu: 0.0.40
codegen_flags: <defaults>
</compile_context>

<pallas_src>
import functools

import jax
import jax.numpy as jnp
from jax.experimental import pallas as pl
from jax.experimental.pallas import tpu as pltpu


def _round_up(x, m):
    return (x + m - 1) // m * m


def _fused_mlp_kernel(x_ref, w_ref, b_ref, o_ref, *, n_layers, activation):
    # x_ref: (Mp, Dp)    zero-padded activations
    # w_ref: (L, Dp, Dp) zero-padded weights (padded rows are zero)
    # b_ref: (L, 1, Dp)  zero-padded biases
    # o_ref: (Mp, Dp)    zero-padded output
    h = x_ref[...].astype(jnp.float32)
    for layer in range(n_layers):  # tiny static layer count -> fully unrolled
        h = activation(h)
        h = jnp.dot(h, w_ref[layer], preferred_element_type=jnp.float32)
        h = h + b_ref[layer]
    o_ref[...] = h.astype(o_ref.dtype)


def mlp_forward(x, params, activation=None):
    """Mirrors MLP.forward: per layer -> activation -> dropout(identity) -> linear.

    x: (M, in_feat); params: list of (W:(d_in, d_out), b:(1, d_out)).
    dropout=-1 in the reference => identity; no Pallas op needed.
    """
    act = activation if activation is not None else (lambda v: v)
    M, in_feat = x.shape
    dims = [in_feat] + [w.shape[1] for (w, _) in params]
    out_feat = dims[-1]
    n_layers = len(params)

    # Lane-dense padded width shared by all layers, sublane-aligned batch.
    dp = max(_round_up(d, 128) for d in dims)
    mp = _round_up(M, 8)

    x_pad = jnp.zeros((mp, dp), x.dtype).at[:M, :in_feat].set(x)
    w_stack = jnp.zeros((n_layers, dp, dp), x.dtype)
    b_stack = jnp.zeros((n_layers, 1, dp), x.dtype)
    for i, (w, b) in enumerate(params):
        d_in, d_out = w.shape
        w_stack = w_stack.at[i, :d_in, :d_out].set(w)
        b_stack = b_stack.at[i, 0, :d_out].set(b.reshape(-1))

    kernel = functools.partial(_fused_mlp_kernel, n_layers=n_layers, activation=act)
    y_pad = pl.pallas_call(
        kernel,
        out_shape=jax.ShapeDtypeStruct((mp, dp), x.dtype),
        in_specs=[
            pl.BlockSpec(memory_space=pltpu.MemorySpace.VMEM),
            pl.BlockSpec(memory_space=pltpu.MemorySpace.VMEM),
            pl.BlockSpec(memory_space=pltpu.MemorySpace.VMEM),
        ],
        out_specs=pl.BlockSpec(memory_space=pltpu.MemorySpace.VMEM),
        compiler_params=pltpu.CompilerParams(
            vmem_limit_bytes=32 * 1024 * 1024,  # explicit; safe on v5e/v6e/v7x
        ),
    )(x_pad, w_stack, b_stack)
    return y_pad[:M, :out_feat]


def init_mlp_params(key, in_feat, out_feat, hid_feat=(64, 48), dtype=jnp.float32):
    """Deterministic init matching PyTorch Linear's U(-1/sqrt(fan_in), 1/sqrt(fan_in))."""
    dims = (in_feat,) + tuple(hid_feat) + (out_feat,)
    params = []
    for i in range(len(dims) - 1):
        key, kw, kb = jax.random.split(key, 3)
        fan_in = dims[i]
        bound = 1.0 / jnp.sqrt(fan_in)
        # stored as (in, out) == transpose of PyTorch's (out, in)
        w = jax.random.uniform(kw, (dims[i], dims[i + 1]), dtype, -bound, bound)
        b = jax.random.uniform(kb, (1, dims[i + 1]), dtype, -bound, bound)
        params.append((w, b))
    return params


# TODO(synk): for large batches / real layer sizes, add an M-tiled grid with
# dimension_semantics=("parallel",) (v7x dual-TC) and optional bf16 matmul
# inputs on v6e/v7x; unnecessary at these tiny shapes.

if __name__ == "__main__":
    key = jax.random.PRNGKey(0)
    key, kx = jax.random.split(key)

    batch, in_feat, out_feat = 8, 32, 16
    hid_feat = (64, 48)

    x = jax.random.normal(kx, (batch, in_feat), dtype=jnp.float32)
    params = init_mlp_params(key, in_feat, out_feat, hid_feat)

    mlp_jit = jax.jit(mlp_forward)  # fuses host-side padding with the kernel call
    y = mlp_jit(x, params)
    y = jax.block_until_ready(y)

    # sanity check against pure-JAX reference
    y_ref = x
    for (w, b) in params:
        y_ref = y_ref @ w + b
    assert y.shape == (batch, out_feat)
    assert jnp.allclose(y, y_ref, atol=1e-5, rtol=1e-5)

    print("KERNEL_OK")
</pallas_src>

<mosaic_0001>
module attributes {stable_mosaic.version = 11 : i64} {
  func.func @_fused_mlp_kernel(%arg0: memref<8x128xf32, #tpu.memory_space<vmem>>, %arg1: memref<3x128x128xf32, #tpu.memory_space<vmem>>, %arg2: memref<3x1x128xf32, #tpu.memory_space<vmem>>, %arg3: memref<8x128xf32, #tpu.memory_space<vmem>>) attributes {dimension_semantics = [], scalar_prefetch = 0 : i64, scratch_operands = 0 : i64, tpu.core_type = #tpu.core_type<tc>} {
    %c0 = arith.constant 0 : index
    %c0_0 = arith.constant 0 : index
    %0 = vector.load %arg0[%c0, %c0_0] : memref<8x128xf32, #tpu.memory_space<vmem>>, vector<8x128xf32>
    %c0_1 = arith.constant 0 : index
    %c0_2 = arith.constant 0 : index
    %c0_3 = arith.constant 0 : index
    %1 = vector.load %arg1[%c0_1, %c0_2, %c0_3] : memref<3x128x128xf32, #tpu.memory_space<vmem>>, vector<1x128x128xf32>
    %2 = vector.shape_cast %1 : vector<1x128x128xf32> to vector<128x128xf32>
    %cst = arith.constant dense<0.000000e+00> : vector<8x128xf32>
    %3 = tpu.matmul %0, %2, %cst {dimension_numbers = #tpu.dot_dimension_numbers<[1], [0], [0], [1], [0, 0, 1, 1], [], []>} : vector<8x128xf32>, vector<128x128xf32>, vector<8x128xf32> -> vector<8x128xf32>
    %c0_4 = arith.constant 0 : index
    %c0_5 = arith.constant 0 : index
    %c0_6 = arith.constant 0 : index
    %4 = vector.load %arg2[%c0_4, %c0_5, %c0_6] : memref<3x1x128xf32, #tpu.memory_space<vmem>>, vector<1x1x128xf32>
    %5 = vector.shape_cast %4 : vector<1x1x128xf32> to vector<1x128xf32>
    %6 = vector.broadcast %5 : vector<1x128xf32> to vector<8x128xf32>
    %7 = arith.addf %3, %6 : vector<8x128xf32>
    %c1 = arith.constant 1 : index
    %c0_7 = arith.constant 0 : index
    %c0_8 = arith.constant 0 : index
    %8 = vector.load %arg1[%c1, %c0_7, %c0_8] : memref<3x128x128xf32, #tpu.memory_space<vmem>>, vector<1x128x128xf32>
    %9 = vector.shape_cast %8 : vector<1x128x128xf32> to vector<128x128xf32>
    %cst_9 = arith.constant dense<0.000000e+00> : vector<8x128xf32>
    %10 = tpu.matmul %7, %9, %cst_9 {dimension_numbers = #tpu.dot_dimension_numbers<[1], [0], [0], [1], [0, 0, 1, 1], [], []>} : vector<8x128xf32>, vector<128x128xf32>, vector<8x128xf32> -> vector<8x128xf32>
    %c1_10 = arith.constant 1 : index
    %c0_11 = arith.constant 0 : index
    %c0_12 = arith.constant 0 : index
    %11 = vector.load %arg2[%c1_10, %c0_11, %c0_12] : memref<3x1x128xf32, #tpu.memory_space<vmem>>, vector<1x1x128xf32>
    %12 = vector.shape_cast %11 : vector<1x1x128xf32> to vector<1x128xf32>
    %13 = vector.broadcast %12 : vector<1x128xf32> to vector<8x128xf32>
    %14 = arith.addf %10, %13 : vector<8x128xf32>
    %c2 = arith.constant 2 : index
    %c0_13 = arith.constant 0 : index
    %c0_14 = arith.constant 0 : index
    %15 = vector.load %arg1[%c2, %c0_13, %c0_14] : memref<3x128x128xf32, #tpu.memory_space<vmem>>, vector<1x128x128xf32>
    %16 = vector.shape_cast %15 : vector<1x128x128xf32> to vector<128x128xf32>
    %cst_15 = arith.constant dense<0.000000e+00> : vector<8x128xf32>
    %17 = tpu.matmul %14, %16, %cst_15 {dimension_numbers = #tpu.dot_dimension_numbers<[1], [0], [0], [1], [0, 0, 1, 1], [], []>} : vector<8x128xf32>, vector<128x128xf32>, vector<8x128xf32> -> vector<8x128xf32>
    %c2_16 = arith.constant 2 : index
    %c0_17 = arith.constant 0 : index
    %c0_18 = arith.constant 0 : index
    %18 = vector.load %arg2[%c2_16, %c0_17, %c0_18] : memref<3x1x128xf32, #tpu.memory_space<vmem>>, vector<1x1x128xf32>
    %19 = vector.shape_cast %18 : vector<1x1x128xf32> to vector<1x128xf32>
    %20 = vector.broadcast %19 : vector<1x128xf32> to vector<8x128xf32>
    %21 = arith.addf %17, %20 : vector<8x128xf32>
    %c0_19 = arith.constant 0 : index
    %c0_20 = arith.constant 0 : index
    %22 = vector.load %arg3[%c0_19, %c0_20] : memref<8x128xf32, #tpu.memory_space<vmem>>, vector<8x128xf32>
    tpu.vector_store %arg3[%c0_19, %c0_20], %21 {strides = array<i32>} : memref<8x128xf32, #tpu.memory_space<vmem>>, vector<8x128xf32>,
    return
  }
}

</mosaic_0001>

<llo_original>
// kernel: mlp_forward.1
$region0: #{mlp_forward.1}
  #allocation0 [shape = 'u32[]', space=smem, size = 0x4, offset = 0x4, fixed_abs, tag = 'smem constant byte address 0x4 - core index']
  #allocation1 [shape = 'u32[144,128]{1,0:T(1,128)}', space=vmem, size = 0x12000, scoped, tag = 'internal scratch']
  %s0 = inlined_call_operand.vmem [shape: f32[8,128], index: 0, kind: input, shape index: {}]
  %s1 = inlined_call_operand.vmem [shape: f32[3,128,128], index: 1, kind: input, shape index: {}]
  %s2 = inlined_call_operand.vmem [shape: f32[3,1,128], index: 2, kind: input, shape index: {}]
  %s3 = inlined_call_operand.hbm [shape: f32[8,128], index: 3, kind: output, shape index: {}]
  %s4 = sld [smem:[#allocation0]]
  $region22: #{mlp_forward.1} parent=0
    _
  %s6 = ssub.s32 1, %s4
  %s7 = scalar_select 0, %s6, %s4
  $region1: #{mlp_forward.1} parent=0
    #allocation2 [shape = 'u8[4096]{0}', space=vmem, size = 0x1000, scoped, tag = 'output window, operand 0, single buffered']
    #allocation3 [shape = 's32[1]{0}', space=sflag, size = 0x4, scoped, tag = 'scoped memory for mlp_forward.1']
    %8 = vsyncpa [#allocation3], 0
    // Predicated region
    $region2: #{mlp_forward.1} parent=1 // pred_check
      _
    $region3: #{mlp_forward.1} parent=1 // pred_check_branch
      %10 = sbr.rel (0) target = $region5
    $region4: #{mlp_forward.1} parent=1 // pred_region
      _
    $region5: #{mlp_forward.1} parent=1 // pred_fallthru
      _
    // Predicated region
    $region6: #{mlp_forward.1} parent=1 // pred_check
      _
    $region7: #{mlp_forward.1} parent=1 // pred_check_branch
      %12 = sbr.rel (0) target = $region9
    $region8: #{mlp_forward.1} parent=1 // pred_region
      _
    $region9: #{mlp_forward.1} parent=1 // pred_fallthru
      _
    // Predicated region
    $region10: #{mlp_forward.1} parent=1 // pred_check
      _
    $region11: #{mlp_forward.1} parent=1 // pred_check_branch
      %14 = sbr.rel (0) target = $region13
    $region12: #{mlp_forward.1} parent=1 // pred_region
      _
    $region13: #{mlp_forward.1} parent=1 // pred_fallthru
      _
    %v15 = vld [vmem:[%s0] sm:$0xff]
    %v16 = vld [vmem:[%s1] sm:$0xff]
    %v17 = vld [vmem:[%s1 + $0x8] sm:$0xff]
    %v18 = vld [vmem:[%s1 + $0x10] sm:$0xff]
    %v19 = vld [vmem:[%s1 + $0x18] sm:$0xff]
    %v20 = vld [vmem:[%s1 + $0x20] sm:$0xff]
    %v21 = vld [vmem:[%s1 + $0x28] sm:$0xff]
    %v22 = vld [vmem:[%s1 + $0x30] sm:$0xff]
    %v23 = vld [vmem:[%s1 + $0x38] sm:$0xff]
    %v24 = vld [vmem:[%s1 + $0x40] sm:$0xff]
    %v25 = vld [vmem:[%s1 + $0x48] sm:$0xff]
    %v26 = vld [vmem:[%s1 + $0x50] sm:$0xff]
    %v27 = vld [vmem:[%s1 + $0x58] sm:$0xff]
    %v28 = vld [vmem:[%s1 + $0x60] sm:$0xff]
    %v29 = vld [vmem:[%s1 + $0x68] sm:$0xff]
    %v30 = vld [vmem:[%s1 + $0x70] sm:$0xff]
    %v31 = vld [vmem:[%s1 + $0x78] sm:$0xff]
    %v32 = vld [vmem:[%s2] sm:$0x1]
    %v34 = vlaneseq
    %v35 = vshrl.u32 %v34, 7
    %v36 = vsub.s32 0, %v35
    %v37 = vrot.slane %v32, %v36
    %39 = vmatprep.subr.mxu0 0.0
    %40 = vmatpush1.msra.mxu0 %v16
    %41 = vmatprep.subr.mxu0 0.0
    %42 = vmatpush1.msra.mxu0 %v17
    %43 = vmatprep.subr.mxu0 0.0
    %44 = vmatpush1.msra.mxu0 %v18
    %45 = vmatprep.subr.mxu0 0.0
    %46 = vmatpush1.msra.mxu0 %v19
    %47 = vmatprep.subr.mxu0 0.0
    %48 = vmatpush1.msra.mxu0 %v20
    %49 = vmatprep.subr.mxu0 0.0
    %50 = vmatpush1.msra.mxu0 %v21
    %51 = vmatprep.subr.mxu0 0.0
    %52 = vmatpush1.msra.mxu0 %v22
    %53 = vmatprep.subr.mxu0 0.0
    %54 = vmatpush1.msra.mxu0 %v23
    %55 = vmatprep.subr.mxu0 0.0
    %56 = vmatpush1.msra.mxu0 %v24
    %57 = vmatprep.subr.mxu0 0.0
    %58 = vmatpush1.msra.mxu0 %v25
    %59 = vmatprep.subr.mxu0 0.0
    %60 = vmatpush1.msra.mxu0 %v26
    %61 = vmatprep.subr.mxu0 0.0
    %62 = vmatpush1.msra.mxu0 %v27
    %63 = vmatprep.subr.mxu0 0.0
    %64 = vmatpush1.msra.mxu0 %v28
    %65 = vmatprep.subr.mxu0 0.0
    %66 = vmatpush1.msra.mxu0 %v29
    %67 = vmatprep.subr.mxu0 0.0
    %68 = vmatpush1.msra.mxu0 %v30
    %69 = vmatprep.subr.mxu0 0.0
    %70 = vmatpush1.msra.mxu0 %v31
    %71 = vmatprep.subr.mxu0 0.0
    %72 = vmatpush1.msra.mxu0 0.0
    %73 = vmatprep.subr.mxu0 0.0
    %74 = vmatpush1.msra.mxu0 0.0
    %75 = vmatprep.subr.mxu0 0.0
    %76 = vmatpush1.msra.mxu0 0.0
    %77 = vmatprep.subr.mxu0 0.0
    %78 = vmatpush1.msra.mxu0 0.0
    %79 = vmatprep.subr.mxu0 0.0
    %80 = vmatpush1.msra.mxu0 0.0
    %81 = vmatprep.subr.mxu0 0.0
    %82 = vmatpush1.msra.mxu0 0.0
    %83 = vmatprep.subr.mxu0 0.0
    %84 = vmatpush1.msra.mxu0 0.0
    %85 = vmatprep.subr.mxu0 0.0
    %86 = vmatpush1.msra.mxu0 0.0
    %87 = vmatprep.subr.mxu0 0.0
    %88 = vmatpush1.msra.mxu0 0.0
    %89 = vmatprep.subr.mxu0 0.0
    %90 = vmatpush1.msra.mxu0 0.0
    %91 = vmatprep.subr.mxu0 0.0
    %92 = vmatpush1.msra.mxu0 0.0
    %93 = vmatprep.subr.mxu0 0.0
    %94 = vmatpush1.msra.mxu0 0.0
    %95 = vmatprep.subr.mxu0 0.0
    %96 = vmatpush1.msra.mxu0 0.0
    %97 = vmatprep.subr.mxu0 0.0
    %98 = vmatpush1.msra.mxu0 0.0
    %99 = vmatprep.subr.mxu0 0.0
    %100 = vmatpush1.msra.mxu0 0.0
    %101 = vmatprep.subr.mxu0 0.0
    %102 = vmatpush1.msra.mxu0 0.0
    %103 = vmatprep.mubr.f32.mxu0 0.0
    %104 = vmatmul.mubr.f32.gmra.mrb[0].mxu0 %v15
    %v105 = vpop.f32.mrb[0].mxu0
    %v106 = vadd.f32 %v37, %v105
    %v107 = vpop.f32.mrb[0].mxu0
    %108 = vdwg.mxu0
    %s109 = scalar_lea.vmem %s1, 128
    %v110 = vld [vmem:[%s109] sm:$0xff]
    %v111 = vld [vmem:[%s109 + $0x8] sm:$0xff]
    %v112 = vld [vmem:[%s109 + $0x10] sm:$0xff]
    %v113 = vld [vmem:[%s109 + $0x18] sm:$0xff]
    %v114 = vld [vmem:[%s109 + $0x20] sm:$0xff]
    %v115 = vld [vmem:[%s109 + $0x28] sm:$0xff]
    %v116 = vld [vmem:[%s109 + $0x30] sm:$0xff]
    %v117 = vld [vmem:[%s109 + $0x38] sm:$0xff]
    %v118 = vld [vmem:[%s109 + $0x40] sm:$0xff]
    %v119 = vld [vmem:[%s109 + $0x48] sm:$0xff]
    %v120 = vld [vmem:[%s109 + $0x50] sm:$0xff]
    %v121 = vld [vmem:[%s109 + $0x58] sm:$0xff]
    %v122 = vld [vmem:[%s109 + $0x60] sm:$0xff]
    %v123 = vld [vmem:[%s109 + $0x68] sm:$0xff]
    %v124 = vld [vmem:[%s109 + $0x70] sm:$0xff]
    %v125 = vld [vmem:[%s109 + $0x78] sm:$0xff]
    %s126 = scalar_lea.vmem %s2, 1
    %v127 = vld [vmem:[%s126] sm:$0x1]
    %v129 = vlaneseq
    %v130 = vshrl.u32 %v129, 7
    %v131 = vsub.s32 0, %v130
    %v132 = vrot.slane %v127, %v131
    %134 = vmatprep.subr.mxu0 0.0
    %135 = vmatpush1.msra.mxu0 %v110
    %136 = vmatprep.subr.mxu0 0.0
    %137 = vmatpush1.msra.mxu0 %v111
    %138 = vmatprep.subr.mxu0 0.0
    %139 = vmatpush1.msra.mxu0 %v112
    %140 = vmatprep.subr.mxu0 0.0
    %141 = vmatpush1.msra.mxu0 %v113
    %142 = vmatprep.subr.mxu0 0.0
    %143 = vmatpush1.msra.mxu0 %v114
    %144 = vmatprep.subr.mxu0 0.0
    %145 = vmatpush1.msra.mxu0 %v115
    %146 = vmatprep.subr.mxu0 0.0
    %147 = vmatpush1.msra.mxu0 %v116
    %148 = vmatprep.subr.mxu0 0.0
    %149 = vmatpush1.msra.mxu0 %v117
    %150 = vmatprep.subr.mxu0 0.0
    %151 = vmatpush1.msra.mxu0 %v118
    %152 = vmatprep.subr.mxu0 0.0
    %153 = vmatpush1.msra.mxu0 %v119
    %154 = vmatprep.subr.mxu0 0.0
    %155 = vmatpush1.msra.mxu0 %v120
    %156 = vmatprep.subr.mxu0 0.0
    %157 = vmatpush1.msra.mxu0 %v121
    %158 = vmatprep.subr.mxu0 0.0
    %159 = vmatpush1.msra.mxu0 %v122
    %160 = vmatprep.subr.mxu0 0.0
    %161 = vmatpush1.msra.mxu0 %v123
    %162 = vmatprep.subr.mxu0 0.0
    %163 = vmatpush1.msra.mxu0 %v124
    %164 = vmatprep.subr.mxu0 0.0
    %165 = vmatpush1.msra.mxu0 %v125
    %166 = vmatprep.subr.mxu0 0.0
    %167 = vmatpush1.msra.mxu0 0.0
    %168 = vmatprep.subr.mxu0 0.0
    %169 = vmatpush1.msra.mxu0 0.0
    %170 = vmatprep.subr.mxu0 0.0
    %171 = vmatpush1.msra.mxu0 0.0
    %172 = vmatprep.subr.mxu0 0.0
    %173 = vmatpush1.msra.mxu0 0.0
    %174 = vmatprep.subr.mxu0 0.0
    %175 = vmatpush1.msra.mxu0 0.0
    %176 = vmatprep.subr.mxu0 0.0
    %177 = vmatpush1.msra.mxu0 0.0
    %178 = vmatprep.subr.mxu0 0.0
    %179 = vmatpush1.msra.mxu0 0.0
    %180 = vmatprep.subr.mxu0 0.0
    %181 = vmatpush1.msra.mxu0 0.0
    %182 = vmatprep.subr.mxu0 0.0
    %183 = vmatpush1.msra.mxu0 0.0
    %184 = vmatprep.subr.mxu0 0.0
    %185 = vmatpush1.msra.mxu0 0.0
    %186 = vmatprep.subr.mxu0 0.0
    %187 = vmatpush1.msra.mxu0 0.0
    %188 = vmatprep.subr.mxu0 0.0
    %189 = vmatpush1.msra.mxu0 0.0
    %190 = vmatprep.subr.mxu0 0.0
    %191 = vmatpush1.msra.mxu0 0.0
    %192 = vmatprep.subr.mxu0 0.0
    %193 = vmatpush1.msra.mxu0 0.0
    %194 = vmatprep.subr.mxu0 0.0
    %195 = vmatpush1.msra.mxu0 0.0
    %196 = vmatprep.subr.mxu0 0.0
    %197 = vmatpush1.msra.mxu0 0.0
    %198 = vmatprep.mubr.f32.mxu0 0.0
    %199 = vmatmul.mubr.f32.gmra.mrb[0].mxu0 %v106
    %v200 = vpop.f32.mrb[0].mxu0
    %v201 = vadd.f32 %v132, %v200
    %v202 = vpop.f32.mrb[0].mxu0
    %203 = vdwg.mxu0
    %s204 = scalar_lea.vmem %s1, 256
    %v205 = vld [vmem:[%s204] sm:$0xff]
    %v206 = vld [vmem:[%s204 + $0x8] sm:$0xff]
    %v207 = vld [vmem:[%s204 + $0x10] sm:$0xff]
    %v208 = vld [vmem:[%s204 + $0x18] sm:$0xff]
    %v209 = vld [vmem:[%s204 + $0x20] sm:$0xff]
    %v210 = vld [vmem:[%s204 + $0x28] sm:$0xff]
    %v211 = vld [vmem:[%s204 + $0x30] sm:$0xff]
    %v212 = vld [vmem:[%s204 + $0x38] sm:$0xff]
    %v213 = vld [vmem:[%s204 + $0x40] sm:$0xff]
    %v214 = vld [vmem:[%s204 + $0x48] sm:$0xff]
    %v215 = vld [vmem:[%s204 + $0x50] sm:$0xff]
    %v216 = vld [vmem:[%s204 + $0x58] sm:$0xff]
    %v217 = vld [vmem:[%s204 + $0x60] sm:$0xff]
    %v218 = vld [vmem:[%s204 + $0x68] sm:$0xff]
    %v219 = vld [vmem:[%s204 + $0x70] sm:$0xff]
    %v220 = vld [vmem:[%s204 + $0x78] sm:$0xff]
    %s221 = scalar_lea.vmem %s2, 2
    %v222 = vld [vmem:[%s221] sm:$0x1]
    %v224 = vlaneseq
    %v225 = vshrl.u32 %v224, 7
    %v226 = vsub.s32 0, %v225
    %v227 = vrot.slane %v222, %v226
    %229 = vmatprep.subr.mxu0 0.0
    %230 = vmatpush1.msra.mxu0 %v205
    %231 = vmatprep.subr.mxu0 0.0
    %232 = vmatpush1.msra.mxu0 %v206
    %233 = vmatprep.subr.mxu0 0.0
    %234 = vmatpush1.msra.mxu0 %v207
    %235 = vmatprep.subr.mxu0 0.0
    %236 = vmatpush1.msra.mxu0 %v208
    %237 = vmatprep.subr.mxu0 0.0
    %238 = vmatpush1.msra.mxu0 %v209
    %239 = vmatprep.subr.mxu0 0.0
    %240 = vmatpush1.msra.mxu0 %v210
    %241 = vmatprep.subr.mxu0 0.0
    %242 = vmatpush1.msra.mxu0 %v211
    %243 = vmatprep.subr.mxu0 0.0
    %244 = vmatpush1.msra.mxu0 %v212
    %245 = vmatprep.subr.mxu0 0.0
    %246 = vmatpush1.msra.mxu0 %v213
    %247 = vmatprep.subr.mxu0 0.0
    %248 = vmatpush1.msra.mxu0 %v214
    %249 = vmatprep.subr.mxu0 0.0
    %250 = vmatpush1.msra.mxu0 %v215
    %251 = vmatprep.subr.mxu0 0.0
    %252 = vmatpush1.msra.mxu0 %v216
    %253 = vmatprep.subr.mxu0 0.0
    %254 = vmatpush1.msra.mxu0 %v217
    %255 = vmatprep.subr.mxu0 0.0
    %256 = vmatpush1.msra.mxu0 %v218
    %257 = vmatprep.subr.mxu0 0.0
    %258 = vmatpush1.msra.mxu0 %v219
    %259 = vmatprep.subr.mxu0 0.0
    %260 = vmatpush1.msra.mxu0 %v220
    %261 = vmatprep.subr.mxu0 0.0
    %262 = vmatpush1.msra.mxu0 0.0
    %263 = vmatprep.subr.mxu0 0.0
    %264 = vmatpush1.msra.mxu0 0.0
    %265 = vmatprep.subr.mxu0 0.0
    %266 = vmatpush1.msra.mxu0 0.0
    %267 = vmatprep.subr.mxu0 0.0
    %268 = vmatpush1.msra.mxu0 0.0
    %269 = vmatprep.subr.mxu0 0.0
    %270 = vmatpush1.msra.mxu0 0.0
    %271 = vmatprep.subr.mxu0 0.0
    %272 = vmatpush1.msra.mxu0 0.0
    %273 = vmatprep.subr.mxu0 0.0
    %274 = vmatpush1.msra.mxu0 0.0
    %275 = vmatprep.subr.mxu0 0.0
    %276 = vmatpush1.msra.mxu0 0.0
    %277 = vmatprep.subr.mxu0 0.0
    %278 = vmatpush1.msra.mxu0 0.0
    %279 = vmatprep.subr.mxu0 0.0
    %280 = vmatpush1.msra.mxu0 0.0
    %281 = vmatprep.subr.mxu0 0.0
    %282 = vmatpush1.msra.mxu0 0.0
    %283 = vmatprep.subr.mxu0 0.0
    %284 = vmatpush1.msra.mxu0 0.0
    %285 = vmatprep.subr.mxu0 0.0
    %286 = vmatpush1.msra.mxu0 0.0
    %287 = vmatprep.subr.mxu0 0.0
    %288 = vmatpush1.msra.mxu0 0.0
    %289 = vmatprep.subr.mxu0 0.0
    %290 = vmatpush1.msra.mxu0 0.0
    %291 = vmatprep.subr.mxu0 0.0
    %292 = vmatpush1.msra.mxu0 0.0
    %293 = vmatprep.mubr.f32.mxu0 0.0
    %294 = vmatmul.mubr.f32.gmra.mrb[0].mxu0 %v201
    %v295 = vpop.f32.mrb[0].mxu0
    %v296 = vadd.f32 %v227, %v295
    %v297 = vpop.f32.mrb[0].mxu0
    %298 = vdwg.mxu0
    %299 = vst [vmem:[#allocation2] sm:$0xff] %v296
    // Predicated region
    $region14: #{mlp_forward.1} parent=1 // pred_check
      _
    $region15: #{mlp_forward.1} parent=1 // pred_check_branch
      %301 = sbr.rel (0) target = $region17
    $region16: #{mlp_forward.1} parent=1 // pred_region
      %s303 = ssub.s32 128, 128
      %304 = vsyncadd [#allocation3], %s303
      %s306 = sshll.u32 [#allocation2], 4
      %s307 = int_to_ptr.vmem [resolvable:$true] %s306
      %309 = dma.vmem_to_hbm [thread:$0]  %s307, 128, %s3, [#allocation3]
    $region17: #{mlp_forward.1} parent=1 // pred_fallthru
      _
    // Predicated region
    $region18: #{mlp_forward.1} parent=1 // pred_check
      _
    $region19: #{mlp_forward.1} parent=1 // pred_check_branch
      %311 = sbr.rel (0) target = $region21
    $region20: #{mlp_forward.1} parent=1 // pred_region
      %312 = dma.done [#allocation3], 128
    $region21: #{mlp_forward.1} parent=1 // pred_fallthru
      _
    %313 = vsyncpa [#allocation3], 1

</llo_original>
